<compile_context>
chip_gen: v7x
topology: tpu7x:2x2x1
jax: 0.10.0
libtpu: 0.0.40
codegen_flags: <defaults>
</compile_context>

<pallas_src>
import functools

import jax
import jax.numpy as jnp
from jax.experimental import pallas as pl
from jax.experimental.pallas import tpu as pltpu

LANE = 128
_MIB = 1024 * 1024


def _round_up(n, m):
    return ((n + m - 1) // m) * m


def _sigmoid_f32(v):
    # exp and approx-reciprocal both route to the EUP slot (denominator >= 1, benign).
    return pl.reciprocal(1.0 + jnp.exp(-v), approx=True)


def _silu_f32(v):
    return v * _sigmoid_f32(v)


def gated_mlp_kernel(x_ref,                      # [TB, D_in]   input dtype (cast to bf16 here)
                     w0c_ref, b0c_ref,           # [D_in, 2*H0p] bf16, [1, 2*H0p] f32 (fused layer 0)
                     w1_ref, b1_ref,             # [H0p, H1] bf16, [1, H1] f32 (linear branch, layer 1)
                     g1_ref, gb1_ref,            # [H0p, H1] bf16, [1, H1] f32 (gating branch, layer 1)
                     o_ref,                      # [TB, H1]
                     *, h0p):
    # f32 -> bf16 cast on the loaded tile (MXU input); accumulation stays f32.
    x = x_ref[...].astype(jnp.bfloat16)

    # Fused first layer for both branches: one MXU pass over [D_in, 2*H0p].
    h01 = jnp.dot(x, w0c_ref[...], preferred_element_type=jnp.float32) + b0c_ref[...]
    h01 = _silu_f32(h01)

    # Column split is lane-tile aligned (h0p is a multiple of 128) -> no relayout.
    h = h01[:, :h0p].astype(jnp.bfloat16)        # linear branch hidden
    g = h01[:, h0p:].astype(jnp.bfloat16)        # gating branch hidden

    lin = _silu_f32(
        jnp.dot(h, w1_ref[...], preferred_element_type=jnp.float32) + b1_ref[...])
    gate = jnp.dot(g, g1_ref[...], preferred_element_type=jnp.float32) + gb1_ref[...]

    o_ref[...] = (lin * _sigmoid_f32(gate)).astype(o_ref.dtype)


def prepare_params(params):
    """One-time parameter prep (hoisted out of the per-call path).

    Pads the hidden dim to a lane multiple, casts weights to bf16, and fuses the two
    first-layer weight matrices into lane-aligned column blocks [w0 | g0].
    """
    d_in, h0 = params["w0"].shape
    h1 = params["w1"].shape[1]
    h0p = _round_up(h0, LANE)

    w0c = jnp.zeros((d_in, 2 * h0p), jnp.bfloat16)
    w0c = w0c.at[:, :h0].set(params["w0"].astype(jnp.bfloat16))
    w0c = w0c.at[:, h0p:h0p + h0].set(params["g0"].astype(jnp.bfloat16))
    b0c = jnp.zeros((1, 2 * h0p), jnp.float32)
    b0c = b0c.at[:, :h0].set(params["b0"].astype(jnp.float32))
    b0c = b0c.at[:, h0p:h0p + h0].set(params["gb0"].astype(jnp.float32))

    # Layer-1 weights: rows padded to h0p (zero rows are inert), true output width H1.
    w1 = jnp.zeros((h0p, h1), jnp.bfloat16).at[:h0, :].set(params["w1"].astype(jnp.bfloat16))
    g1 = jnp.zeros((h0p, h1), jnp.bfloat16).at[:h0, :].set(params["g1"].astype(jnp.bfloat16))
    b1 = params["b1"].astype(jnp.float32).reshape(1, h1)
    gb1 = params["gb1"].astype(jnp.float32).reshape(1, h1)

    return dict(w0c=w0c, b0c=b0c, w1=w1, b1=b1, g1=g1, gb1=gb1,
                d_in=d_in, h0p=h0p, h1=h1)


def _vmem_ceiling_bytes():
    # ~85% of physical VMEM, capped at 100 MiB (v5e/v6e). Fallback is safe on every
    # generation (>= all scoped defaults, <= v7x's 64 MiB physical).
    try:
        cap = int(pltpu.get_tpu_info().vmem_capacity_bytes)
        return min(int(cap * 0.85), 100 * _MIB)
    except Exception:
        return 48 * _MIB


def gated_mlp(x, prepped, *, block_b=512, out_dtype=None):
    """x: [B, D_in] (f32 or bf16, unpadded); prepped: prepare_params() output. -> [B, H1]."""
    B, D_in = x.shape
    assert D_in == prepped["d_in"], "x feature dim does not match prepared params"
    h0p, h1 = prepped["h0p"], prepped["h1"]
    out_dtype = x.dtype if out_dtype is None else out_dtype

    w0c, b0c = prepped["w0c"], prepped["b0c"]
    w1, b1 = prepped["w1"], prepped["b1"]
    g1, gb1 = prepped["g1"], prepped["gb1"]

    weights_bytes = sum(int(a.size) * a.dtype.itemsize
                        for a in (w0c, b0c, w1, b1, g1, gb1))
    ceiling = _vmem_ceiling_bytes()

    # Batch tile: weights are resident, so TB only costs x/out tile VMEM (+ f32
    # intermediates). Start large (fewer grid steps -> less per-step overhead) and
    # shrink to fit ~60% of the VMEM ceiling. A full-batch block is always legal.
    tb = min(block_b, B) if B % 8 == 0 else B

    def _tile_bytes(t):
        io = 2 * (t * D_in * x.dtype.itemsize + t * h1 * jnp.dtype(out_dtype).itemsize)
        interm = t * (2 * h0p) * 4 + 2 * t * h1 * 4          # h01 + lin/gate (f32)
        return io + interm

    while (weights_bytes + _tile_bytes(tb) > int(ceiling * 0.6)
           and tb >= 16 and (tb // 2) % 8 == 0):
        tb //= 2

    grid = (pl.cdiv(B, tb),)

    cost = pl.CostEstimate(
        flops=int(2 * B * (D_in * 2 * h0p + 2 * h0p * h1)),
        transcendentals=int(B * (2 * h0p + 2 * h1)),
        bytes_accessed=int(x.size * x.dtype.itemsize + weights_bytes
                           + B * h1 * jnp.dtype(out_dtype).itemsize),
    )

    vmem_limit = int(min(ceiling, max(2 * (weights_bytes + _tile_bytes(tb)), 32 * _MIB)))

    return pl.pallas_call(
        functools.partial(gated_mlp_kernel, h0p=h0p),
        out_shape=jax.ShapeDtypeStruct((B, h1), out_dtype),
        grid=grid,
        in_specs=[
            pl.BlockSpec((tb, D_in), lambda i: (i, 0)),        # x tile (pipelined over batch)
            pl.BlockSpec((D_in, 2 * h0p), lambda i: (0, 0)),   # fused W0 (VMEM-resident)
            pl.BlockSpec((1, 2 * h0p), lambda i: (0, 0)),      # fused b0
            pl.BlockSpec((h0p, h1), lambda i: (0, 0)),         # w1
            pl.BlockSpec((1, h1), lambda i: (0, 0)),           # b1
            pl.BlockSpec((h0p, h1), lambda i: (0, 0)),         # g1
            pl.BlockSpec((1, h1), lambda i: (0, 0)),           # gb1
        ],
        out_specs=pl.BlockSpec((tb, h1), lambda i: (i, 0)),
        compiler_params=pltpu.CompilerParams(
            dimension_semantics=("parallel",),
            vmem_limit_bytes=vmem_limit,
        ),
        cost_estimate=cost,
    )(x, w0c, b0c, w1, b1, g1, gb1)


def init_params(key, d_in, neurons):
    """Deterministic parameter init (synthetic; shapes follow the nn.Linear layers)."""
    h0, h1 = neurons
    keys = jax.random.split(key, 8)

    def lin_init(kw, kb, fan_in, fan_out):
        scale = 1.0 / jnp.sqrt(fan_in)
        w = jax.random.uniform(kw, (fan_in, fan_out), jnp.float32, -scale, scale)
        b = jax.random.uniform(kb, (1, fan_out), jnp.float32, -scale, scale)
        return w, b

    w0, b0 = lin_init(keys[0], keys[1], d_in, h0)
    w1, b1 = lin_init(keys[2], keys[3], h0, h1)
    g0, gb0 = lin_init(keys[4], keys[5], d_in, h0)
    g1, gb1 = lin_init(keys[6], keys[7], h0, h1)
    return dict(w0=w0, b0=b0, w1=w1, b1=b1, g0=g0, gb0=gb0, g1=g1, gb1=gb1)


def gated_mlp_ref(x, p):
    """Pure-JAX reference emulating the kernel's bf16-in / f32-accumulate matmuls."""
    def bdot(a, b):
        return jnp.dot(a.astype(jnp.bfloat16), b.astype(jnp.bfloat16),
                       preferred_element_type=jnp.float32)

    def silu(v):
        return v * jax.nn.sigmoid(v)

    h = silu(bdot(x, p["w0"]) + p["b0"])
    g = silu(bdot(x, p["g0"]) + p["gb0"])
    lin = silu(bdot(h, p["w1"]) + p["b1"])
    gate = bdot(g, p["g1"]) + p["gb1"]
    return lin * jax.nn.sigmoid(gate)


if __name__ == "__main__":
    key = jax.random.PRNGKey(0)
    k_x, k_p = jax.random.split(key)

    B, D_IN = 32, 16
    NEURONS = [32, 32]

    x = jax.random.normal(k_x, (B, D_IN), jnp.float32)
    params = init_params(k_p, D_IN, NEURONS)
    prepped = prepare_params(params)      # one-time weight prep, reused across calls

    out = jax.block_until_ready(gated_mlp(x, prepped))                    # single-step grid
    out_tiled = jax.block_until_ready(gated_mlp(x, prepped, block_b=8))   # multi-step pipelined grid

    ref = gated_mlp_ref(x, params)
    assert out.shape == (B, NEURONS[-1])
    # bf16 MXU inputs + EUP approx-reciprocal sigmoid -> loosened tolerance vs f32 reference.
    assert jnp.allclose(out, ref, atol=1e-2, rtol=1e-2), "mismatch vs reference (single tile)"
    assert jnp.allclose(out_tiled, ref, atol=1e-2, rtol=1e-2), "mismatch vs reference (tiled)"

    print("KERNEL_OK")
</pallas_src>

<mosaic_0001>
module attributes {stable_mosaic.version = 11 : i64} {
  func.func @gated_mlp_kernel(%arg0: i32, %arg1: memref<32x16xf32, #tpu.memory_space<vmem>>, %arg2: memref<16x256xbf16, #tpu.memory_space<vmem>>, %arg3: memref<1x256xf32, #tpu.memory_space<vmem>>, %arg4: memref<128x32xbf16, #tpu.memory_space<vmem>>, %arg5: memref<1x32xf32, #tpu.memory_space<vmem>>, %arg6: memref<128x32xbf16, #tpu.memory_space<vmem>>, %arg7: memref<1x32xf32, #tpu.memory_space<vmem>>, %arg8: memref<32x32xf32, #tpu.memory_space<vmem>>) attributes {dimension_semantics = [#tpu.dimension_semantics<parallel>], iteration_bounds = array<i64: 1>, scalar_prefetch = 0 : i64, scratch_operands = 0 : i64, tpu.core_type = #tpu.core_type<tc>, window_params = [{transform_indices = @transform_0, window_bounds = array<i64: 32, 16>}, {pipeline_mode = #tpu.pipeline_mode<synchronous>, transform_indices = @transform_1, window_bounds = array<i64: 16, 256>}, {pipeline_mode = #tpu.pipeline_mode<synchronous>, transform_indices = @transform_2, window_bounds = array<i64: 1, 256>}, {pipeline_mode = #tpu.pipeline_mode<synchronous>, transform_indices = @transform_3, window_bounds = array<i64: 128, 32>}, {pipeline_mode = #tpu.pipeline_mode<synchronous>, transform_indices = @transform_4, window_bounds = array<i64: 1, 32>}, {pipeline_mode = #tpu.pipeline_mode<synchronous>, transform_indices = @transform_5, window_bounds = array<i64: 128, 32>}, {pipeline_mode = #tpu.pipeline_mode<synchronous>, transform_indices = @transform_6, window_bounds = array<i64: 1, 32>}, {transform_indices = @transform_7, window_bounds = array<i64: 32, 32>}]} {
    %c0 = arith.constant 0 : index
    %c0_0 = arith.constant 0 : index
    %0 = vector.load %arg1[%c0, %c0_0] : memref<32x16xf32, #tpu.memory_space<vmem>>, vector<32x16xf32>
    %1 = arith.truncf %0 : vector<32x16xf32> to vector<32x16xbf16>
    %c0_1 = arith.constant 0 : index
    %c0_2 = arith.constant 0 : index
    %2 = vector.load %arg2[%c0_1, %c0_2] : memref<16x256xbf16, #tpu.memory_space<vmem>>, vector<16x256xbf16>
    %cst = arith.constant dense<0.000000e+00> : vector<32x256xf32>
    %3 = tpu.matmul %1, %2, %cst {dimension_numbers = #tpu.dot_dimension_numbers<[1], [0], [0], [1], [0, 0, 1, 1], [], []>} : vector<32x16xbf16>, vector<16x256xbf16>, vector<32x256xf32> -> vector<32x256xf32>
    %c0_3 = arith.constant 0 : index
    %c0_4 = arith.constant 0 : index
    %4 = vector.load %arg3[%c0_3, %c0_4] : memref<1x256xf32, #tpu.memory_space<vmem>>, vector<1x256xf32>
    %5 = vector.broadcast %4 : vector<1x256xf32> to vector<32x256xf32>
    %6 = arith.addf %3, %5 : vector<32x256xf32>
    %cst_5 = arith.constant 0.000000e+00 : f32
    %7 = vector.broadcast %cst_5 : f32 to vector<32x256xf32>
    %8 = arith.subf %7, %6 : vector<32x256xf32>
    %9 = math.exp %8 : vector<32x256xf32>
    %cst_6 = arith.constant 1.000000e+00 : f32
    %10 = vector.broadcast %cst_6 : f32 to vector<32x256xf32>
    %11 = arith.addf %10, %9 : vector<32x256xf32>
    %12 = tpu.reciprocal %11 {approx = true} : vector<32x256xf32> -> vector<32x256xf32>
    %13 = arith.mulf %6, %12 : vector<32x256xf32>
    %14 = vector.extract_strided_slice %13 {offsets = [0, 0], sizes = [32, 128], strides = [1, 1]} : vector<32x256xf32> to vector<32x128xf32>
    %15 = arith.truncf %14 : vector<32x128xf32> to vector<32x128xbf16>
    %16 = vector.extract_strided_slice %13 {offsets = [0, 128], sizes = [32, 128], strides = [1, 1]} : vector<32x256xf32> to vector<32x128xf32>
    %17 = arith.truncf %16 : vector<32x128xf32> to vector<32x128xbf16>
    %c0_7 = arith.constant 0 : index
    %c0_8 = arith.constant 0 : index
    %18 = vector.load %arg4[%c0_7, %c0_8] : memref<128x32xbf16, #tpu.memory_space<vmem>>, vector<128x32xbf16>
    %cst_9 = arith.constant dense<0.000000e+00> : vector<32x32xf32>
    %19 = tpu.matmul %15, %18, %cst_9 {dimension_numbers = #tpu.dot_dimension_numbers<[1], [0], [0], [1], [0, 0, 1, 1], [], []>} : vector<32x128xbf16>, vector<128x32xbf16>, vector<32x32xf32> -> vector<32x32xf32>
    %c0_10 = arith.constant 0 : index
    %c0_11 = arith.constant 0 : index
    %20 = vector.load %arg5[%c0_10, %c0_11] : memref<1x32xf32, #tpu.memory_space<vmem>>, vector<1x32xf32>
    %21 = vector.broadcast %20 : vector<1x32xf32> to vector<32x32xf32>
    %22 = arith.addf %19, %21 : vector<32x32xf32>
    %cst_12 = arith.constant 0.000000e+00 : f32
    %23 = vector.broadcast %cst_12 : f32 to vector<32x32xf32>
    %24 = arith.subf %23, %22 : vector<32x32xf32>
    %25 = math.exp %24 : vector<32x32xf32>
    %cst_13 = arith.constant 1.000000e+00 : f32
    %26 = vector.broadcast %cst_13 : f32 to vector<32x32xf32>
    %27 = arith.addf %26, %25 : vector<32x32xf32>
    %28 = tpu.reciprocal %27 {approx = true} : vector<32x32xf32> -> vector<32x32xf32>
    %29 = arith.mulf %22, %28 : vector<32x32xf32>
    %c0_14 = arith.constant 0 : index
    %c0_15 = arith.constant 0 : index
    %30 = vector.load %arg6[%c0_14, %c0_15] : memref<128x32xbf16, #tpu.memory_space<vmem>>, vector<128x32xbf16>
    %cst_16 = arith.constant dense<0.000000e+00> : vector<32x32xf32>
    %31 = tpu.matmul %17, %30, %cst_16 {dimension_numbers = #tpu.dot_dimension_numbers<[1], [0], [0], [1], [0, 0, 1, 1], [], []>} : vector<32x128xbf16>, vector<128x32xbf16>, vector<32x32xf32> -> vector<32x32xf32>
    %c0_17 = arith.constant 0 : index
    %c0_18 = arith.constant 0 : index
    %32 = vector.load %arg7[%c0_17, %c0_18] : memref<1x32xf32, #tpu.memory_space<vmem>>, vector<1x32xf32>
    %33 = vector.broadcast %32 : vector<1x32xf32> to vector<32x32xf32>
    %34 = arith.addf %31, %33 : vector<32x32xf32>
    %cst_19 = arith.constant 0.000000e+00 : f32
    %35 = vector.broadcast %cst_19 : f32 to vector<32x32xf32>
    %36 = arith.subf %35, %34 : vector<32x32xf32>
    %37 = math.exp %36 : vector<32x32xf32>
    %cst_20 = arith.constant 1.000000e+00 : f32
    %38 = vector.broadcast %cst_20 : f32 to vector<32x32xf32>
    %39 = arith.addf %38, %37 : vector<32x32xf32>
    %40 = tpu.reciprocal %39 {approx = true} : vector<32x32xf32> -> vector<32x32xf32>
    %41 = arith.mulf %29, %40 : vector<32x32xf32>
    %c0_21 = arith.constant 0 : index
    %c0_22 = arith.constant 0 : index
    %42 = vector.load %arg8[%c0_21, %c0_22] : memref<32x32xf32, #tpu.memory_space<vmem>>, vector<32x32xf32>
    tpu.vector_store %arg8[%c0_21, %c0_22], %41 {strides = array<i32>} : memref<32x32xf32, #tpu.memory_space<vmem>>, vector<32x32xf32>,
    return
  }
  func.func @transform_0(%arg0: i32) -> (i32, i32) {
    %c0_i32 = arith.constant 0 : i32
    %c0_i32_0 = arith.constant 0 : i32
    return %arg0, %c0_i32 : i32, i32
  }
  func.func @transform_1(%arg0: i32) -> (i32, i32) {
    %c0_i32 = arith.constant 0 : i32
    %c0_i32_0 = arith.constant 0 : i32
    %c0_i32_1 = arith.constant 0 : i32
    return %c0_i32, %c0_i32_0 : i32, i32
  }
  func.func @transform_2(%arg0: i32) -> (i32, i32) {
    %c0_i32 = arith.constant 0 : i32
    %c0_i32_0 = arith.constant 0 : i32
    %c0_i32_1 = arith.constant 0 : i32
    return %c0_i32, %c0_i32_0 : i32, i32
  }
  func.func @transform_3(%arg0: i32) -> (i32, i32) {
    %c0_i32 = arith.constant 0 : i32
    %c0_i32_0 = arith.constant 0 : i32
    %c0_i32_1 = arith.constant 0 : i32
    return %c0_i32, %c0_i32_0 : i32, i32
  }
  func.func @transform_4(%arg0: i32) -> (i32, i32) {
    %c0_i32 = arith.constant 0 : i32
    %c0_i32_0 = arith.constant 0 : i32
    %c0_i32_1 = arith.constant 0 : i32
    return %c0_i32, %c0_i32_0 : i32, i32
  }
  func.func @transform_5(%arg0: i32) -> (i32, i32) {
    %c0_i32 = arith.constant 0 : i32
    %c0_i32_0 = arith.constant 0 : i32
    %c0_i32_1 = arith.constant 0 : i32
    return %c0_i32, %c0_i32_0 : i32, i32
  }
  func.func @transform_6(%arg0: i32) -> (i32, i32) {
    %c0_i32 = arith.constant 0 : i32
    %c0_i32_0 = arith.constant 0 : i32
    %c0_i32_1 = arith.constant 0 : i32
    return %c0_i32, %c0_i32_0 : i32, i32
  }
  func.func @transform_7(%arg0: i32) -> (i32, i32) {
    %c0_i32 = arith.constant 0 : i32
    %c0_i32_0 = arith.constant 0 : i32
    return %arg0, %c0_i32 : i32, i32
  }
}

</mosaic_0001>

<llo_original>
// kernel: tpu_custom_call.1
$region0: #{tpu_custom_call.1}
  #allocation0 [shape = 'u32[]', space=smem, size = 0x4, offset = 0x4, fixed_abs, tag = 'smem constant byte address 0x4 - core index']
  #allocation1 [shape = 'u32[144,128]{1,0:T(1,128)}', space=vmem, size = 0x12000, scoped, tag = 'internal scratch']
  %s0 = inlined_call_operand.vmem [shape: f32[32,16], index: 0, kind: input, shape index: {}]
  %s1 = inlined_call_operand.vmem [shape: bf16[16,256], index: 1, kind: input, shape index: {}]
  %s2 = inlined_call_operand.vmem [shape: f32[1,256], index: 2, kind: input, shape index: {}]
  %s3 = inlined_call_operand.vmem [shape: bf16[128,32], index: 3, kind: input, shape index: {}]
  %s4 = inlined_call_operand.vmem [shape: f32[1,32], index: 4, kind: input, shape index: {}]
  %s5 = inlined_call_operand.vmem [shape: bf16[128,32], index: 5, kind: input, shape index: {}]
  %s6 = inlined_call_operand.vmem [shape: f32[1,32], index: 6, kind: input, shape index: {}]
  %s7 = inlined_call_operand.hbm [shape: f32[32,32], index: 7, kind: output, shape index: {}]
  %s8 = sld [smem:[#allocation0]]
  $region38: #{tpu_custom_call.1} parent=0
    _
  %s10 = ssub.s32 1, %s8
  %s11 = scalar_select 0, %s10, %s8
  $region1: #{tpu_custom_call.1} parent=0
    #allocation2 [shape = 'u8[16384]{0}', space=vmem, size = 0x4000, scoped, tag = 'output window, operand 0, single buffered']
    #allocation3 [shape = 's32[1]{0}', space=sflag, size = 0x4, scoped, tag = 'scoped memory for tpu_custom_call.1']
    %12 = vsyncpa [#allocation3], 0
    // Predicated region
    $region2: #{tpu_custom_call.1} parent=1 // pred_check
      _
    $region3: #{tpu_custom_call.1} parent=1 // pred_check_branch
      %14 = sbr.rel (0) target = $region5
    $region4: #{tpu_custom_call.1} parent=1 // pred_region
      _
    $region5: #{tpu_custom_call.1} parent=1 // pred_fallthru
      _
    // Predicated region
    $region6: #{tpu_custom_call.1} parent=1 // pred_check
      _
    $region7: #{tpu_custom_call.1} parent=1 // pred_check_branch
      %16 = sbr.rel (0) target = $region9
    $region8: #{tpu_custom_call.1} parent=1 // pred_region
      _
    $region9: #{tpu_custom_call.1} parent=1 // pred_fallthru
      _
    // Predicated region
    $region10: #{tpu_custom_call.1} parent=1 // pred_check
      _
    $region11: #{tpu_custom_call.1} parent=1 // pred_check_branch
      %18 = sbr.rel (0) target = $region13
    $region12: #{tpu_custom_call.1} parent=1 // pred_region
      _
    $region13: #{tpu_custom_call.1} parent=1 // pred_fallthru
      _
    // Predicated region
    $region14: #{tpu_custom_call.1} parent=1 // pred_check
      _
    $region15: #{tpu_custom_call.1} parent=1 // pred_check_branch
      %20 = sbr.rel (0) target = $region17
    $region16: #{tpu_custom_call.1} parent=1 // pred_region
      _
    $region17: #{tpu_custom_call.1} parent=1 // pred_fallthru
      _
    // Predicated region
    $region18: #{tpu_custom_call.1} parent=1 // pred_check
      _
    $region19: #{tpu_custom_call.1} parent=1 // pred_check_branch
      %22 = sbr.rel (0) target = $region21
    $region20: #{tpu_custom_call.1} parent=1 // pred_region
      _
    $region21: #{tpu_custom_call.1} parent=1 // pred_fallthru
      _
    // Predicated region
    $region22: #{tpu_custom_call.1} parent=1 // pred_check
      _
    $region23: #{tpu_custom_call.1} parent=1 // pred_check_branch
      %24 = sbr.rel (0) target = $region25
    $region24: #{tpu_custom_call.1} parent=1 // pred_region
      _
    $region25: #{tpu_custom_call.1} parent=1 // pred_fallthru
      _
    // Predicated region
    $region26: #{tpu_custom_call.1} parent=1 // pred_check
      _
    $region27: #{tpu_custom_call.1} parent=1 // pred_check_branch
      %26 = sbr.rel (0) target = $region29
    $region28: #{tpu_custom_call.1} parent=1 // pred_region
      _
    $region29: #{tpu_custom_call.1} parent=1 // pred_fallthru
      _
    %v28 = vld [vmem:[%s0] sm:$0xff]
    %v29 = vld [vmem:[%s0 + $0x8] sm:$0xff]
    %v30 = vld [vmem:[%s0 + $0x10] sm:$0xff]
    %v31 = vld [vmem:[%s0 + $0x18] sm:$0xff]
    %v32 = vpack.c.bf16 %v29, %v28
    %v33 = vpack.c.bf16 %v31, %v30
    %v34 = vld [vmem:[%s1] sm:$0xff]
    %v35 = vld [vmem:[%s1 + $0x8] sm:$0xff]
    %v36 = vld [vmem:[%s2] sm:$0x3]
    %v38 = vlaneseq
    %v39 = vshrl.u32 %v38, 7
    %v40 = vsub.s32 0, %v39
    %v41 = vrot.slane %v36, %v40
    %v42 = vlaneseq
    %v43 = vshrl.u32 %v42, 7
    %v44 = vsub.s32 1, %v43
    %v45 = vrot.slane %v36, %v44
    %v50 = vunpack.c.l.b16 %v34
    %v51 = vunpack.c.h.b16 %v34
    %v52 = vunpack.c.l.b16 %v35
    %v53 = vunpack.c.h.b16 %v35
    %v54 = vpack.c.b16 %v52, %v50
    %v55 = vpack.c.b16 %v53, %v51
    %vm58 = vcmask 130048
    %v60 = vsel %vm58, %v32, 0
    %v63 = vsel %vm58, %v33, 0
    %65 = vmatprep.subr.bf16.mxu0 %v55
    %66 = vmatpush1.bf16.msra.mxu0 %v54
    %67 = vmatprep.subr.bf16.mxu0 0
    %68 = vmatpush1.bf16.msra.mxu0 0
    %69 = vmatprep.subr.bf16.mxu0 0
    %70 = vmatpush1.bf16.msra.mxu0 0
    %71 = vmatprep.subr.bf16.mxu0 0
    %72 = vmatpush1.bf16.msra.mxu0 0
    %73 = vmatprep.subr.bf16.mxu0 0
    %74 = vmatpush1.bf16.msra.mxu0 0
    %75 = vmatprep.subr.bf16.mxu0 0
    %76 = vmatpush1.bf16.msra.mxu0 0
    %77 = vmatprep.subr.bf16.mxu0 0
    %78 = vmatpush1.bf16.msra.mxu0 0
    %79 = vmatprep.subr.bf16.mxu0 0
    %80 = vmatpush1.bf16.msra.mxu0 0
    %81 = vmatprep.subr.bf16.mxu0 0
    %82 = vmatpush1.bf16.msra.mxu0 0
    %83 = vmatprep.subr.bf16.mxu0 0
    %84 = vmatpush1.bf16.msra.mxu0 0
    %85 = vmatprep.subr.bf16.mxu0 0
    %86 = vmatpush1.bf16.msra.mxu0 0
    %87 = vmatprep.subr.bf16.mxu0 0
    %88 = vmatpush1.bf16.msra.mxu0 0
    %89 = vmatprep.subr.bf16.mxu0 0
    %90 = vmatpush1.bf16.msra.mxu0 0
    %91 = vmatprep.subr.bf16.mxu0 0
    %92 = vmatpush1.bf16.msra.mxu0 0
    %93 = vmatprep.subr.bf16.mxu0 0
    %94 = vmatpush1.bf16.msra.mxu0 0
    %95 = vmatprep.subr.bf16.mxu0 0
    %96 = vmatpush1.bf16.msra.mxu0 0
    %97 = vmatprep.mubr.bf16.mxu0 0
    %98 = vmatmul.mubr.bf16.gmra.mrb[0].mxu0 %v60
    %v99 = vpop.f32.mrb[0].mxu0
    %v100 = vadd.f32 %v41, %v99
    %v101 = vpop.f32.mrb[0].mxu0
    %v102 = vadd.f32 %v45, %v101
    %v103 = vpop.f32.mrb[0].mxu0
    %v104 = vadd.f32 %v41, %v103
    %v105 = vpop.f32.mrb[0].mxu0
    %v106 = vadd.f32 %v45, %v105
    %107 = vmatprep.mubr.bf16.mxu0 0
    %108 = vmatmul.mubr.bf16.gmra.mrb[0].mxu0 %v63
    %v109 = vpop.f32.mrb[0].mxu0
    %v110 = vadd.f32 %v41, %v109
    %v111 = vpop.f32.mrb[0].mxu0
    %v112 = vadd.f32 %v45, %v111
    %v113 = vpop.f32.mrb[0].mxu0
    %v114 = vadd.f32 %v41, %v113
    %v115 = vpop.f32.mrb[0].mxu0
    %v116 = vadd.f32 %v45, %v115
    %117 = vdwg.mxu0
    %v118 = vsub.f32 0.0, %v100
    %v119 = vsub.f32 0.0, %v102
    %v120 = vsub.f32 0.0, %v104
    %v121 = vsub.f32 0.0, %v106
    %v122 = vsub.f32 0.0, %v110
    %v123 = vsub.f32 0.0, %v112
    %v124 = vsub.f32 0.0, %v114
    %v125 = vsub.f32 0.0, %v116
    %v126 = vmul.f32 %v118, 1.442695
    %v127 = vpow.pop %v126
    %v128 = vmul.f32 %v119, 1.442695
    %v129 = vpow.pop %v128
    %v130 = vmul.f32 %v120, 1.442695
    %v131 = vpow.pop %v130
    %v132 = vmul.f32 %v121, 1.442695
    %v133 = vpow.pop %v132
    %v134 = vmul.f32 %v122, 1.442695
    %v135 = vpow.pop %v134
    %v136 = vmul.f32 %v123, 1.442695
    %v137 = vpow.pop %v136
    %v138 = vmul.f32 %v124, 1.442695
    %v139 = vpow.pop %v138
    %v140 = vmul.f32 %v125, 1.442695
    %v141 = vpow.pop %v140
    %v142 = vadd.f32 %v127, 1.0
    %v143 = vadd.f32 %v129, 1.0
    %v144 = vadd.f32 %v131, 1.0
    %v145 = vadd.f32 %v133, 1.0
    %v146 = vadd.f32 %v135, 1.0
    %v147 = vadd.f32 %v137, 1.0
    %v148 = vadd.f32 %v139, 1.0
    %v149 = vadd.f32 %v141, 1.0
    %v150 = vrcp.pop %v142
    %v151 = vrcp.pop %v143
    %v152 = vrcp.pop %v144
    %v153 = vrcp.pop %v145
    %v154 = vrcp.pop %v146
    %v155 = vrcp.pop %v147
    %v156 = vrcp.pop %v148
    %v157 = vrcp.pop %v149
    %v158 = vmul.f32 %v100, %v150
    %v159 = vmul.f32 %v102, %v151
    %v160 = vmul.f32 %v104, %v152
    %v161 = vmul.f32 %v106, %v153
    %v162 = vmul.f32 %v110, %v154
    %v163 = vmul.f32 %v112, %v155
    %v164 = vmul.f32 %v114, %v156
    %v165 = vmul.f32 %v116, %v157
    %v166 = vpack.c.bf16 %v160, %v158
    %v167 = vpack.c.bf16 %v164, %v162
    %v168 = vpack.c.bf16 %v161, %v159
    %v169 = vpack.c.bf16 %v165, %v163
    %v170 = vld [vmem:[%s3] sm:$0xf]
    %v171 = vld [vmem:[%s3 + $0x4] sm:$0xf]
    %v172 = vld [vmem:[%s3 + $0x8] sm:$0xf]
    %v173 = vld [vmem:[%s3 + $0xc] sm:$0xf]
    %v174 = vld [vmem:[%s3 + $0x10] sm:$0xf]
    %v175 = vld [vmem:[%s3 + $0x14] sm:$0xf]
    %v176 = vld [vmem:[%s3 + $0x18] sm:$0xf]
    %v177 = vld [vmem:[%s3 + $0x1c] sm:$0xf]
    %v178 = vld [vmem:[%s3 + $0x20] sm:$0xf]
    %v179 = vld [vmem:[%s3 + $0x24] sm:$0xf]
    %v180 = vld [vmem:[%s3 + $0x28] sm:$0xf]
    %v181 = vld [vmem:[%s3 + $0x2c] sm:$0xf]
    %v182 = vld [vmem:[%s3 + $0x30] sm:$0xf]
    %v183 = vld [vmem:[%s3 + $0x34] sm:$0xf]
    %v184 = vld [vmem:[%s3 + $0x38] sm:$0xf]
    %v185 = vld [vmem:[%s3 + $0x3c] sm:$0xf]
    %v186 = vld [vmem:[%s4] sm:$0x1]
    %v188 = vlaneseq
    %v189 = vshrl.u32 %v188, 7
    %v190 = vsub.s32 0, %v189
    %v191 = vrot.slane %v186, %v190
    %v209 = vunpack.c.l.b16 %v170
    %v210 = vunpack.c.l.b16 %v171
    %v211 = vunpack.c.l.b16 %v172
    %v212 = vunpack.c.l.b16 %v173
    %v213 = vunpack.c.l.b16 %v174
    %v214 = vunpack.c.l.b16 %v175
    %v215 = vunpack.c.l.b16 %v176
    %v216 = vunpack.c.l.b16 %v177
    %v217 = vunpack.c.l.b16 %v178
    %v218 = vunpack.c.l.b16 %v179
    %v219 = vunpack.c.l.b16 %v180
    %v220 = vunpack.c.l.b16 %v181
    %v221 = vunpack.c.l.b16 %v182
    %v222 = vunpack.c.l.b16 %v183
    %v223 = vunpack.c.l.b16 %v184
    %v224 = vunpack.c.l.b16 %v185
    %v225 = vpack.c.b16 %v210, %v209
    %v226 = vpack.c.b16 %v212, %v211
    %v227 = vpack.c.b16 %v214, %v213
    %v228 = vpack.c.b16 %v216, %v215
    %v229 = vpack.c.b16 %v218, %v217
    %v230 = vpack.c.b16 %v220, %v219
    %v231 = vpack.c.b16 %v222, %v221
    %v232 = vpack.c.b16 %v224, %v223
    %241 = vmatprep.subr.bf16.mxu0 0
    %242 = vmatpush1.bf16.msra.mxu0 %v225
    %243 = vmatprep.subr.bf16.mxu0 0
    %244 = vmatpush1.bf16.msra.mxu0 %v226
    %245 = vmatprep.subr.bf16.mxu0 0
    %246 = vmatpush1.bf16.msra.mxu0 %v227
    %247 = vmatprep.subr.bf16.mxu0 0
    %248 = vmatpush1.bf16.msra.mxu0 %v228
    %249 = vmatprep.subr.bf16.mxu0 0
    %250 = vmatpush1.bf16.msra.mxu0 %v229
    %251 = vmatprep.subr.bf16.mxu0 0
    %252 = vmatpush1.bf16.msra.mxu0 %v230
    %253 = vmatprep.subr.bf16.mxu0 0
    %254 = vmatpush1.bf16.msra.mxu0 %v231
    %255 = vmatprep.subr.bf16.mxu0 0
    %256 = vmatpush1.bf16.msra.mxu0 %v232
    %257 = vmatprep.subr.bf16.mxu0 0
    %258 = vmatpush1.bf16.msra.mxu0 0
    %259 = vmatprep.subr.bf16.mxu0 0
    %260 = vmatpush1.bf16.msra.mxu0 0
    %261 = vmatprep.subr.bf16.mxu0 0
    %262 = vmatpush1.bf16.msra.mxu0 0
    %263 = vmatprep.subr.bf16.mxu0 0
    %264 = vmatpush1.bf16.msra.mxu0 0
    %265 = vmatprep.subr.bf16.mxu0 0
    %266 = vmatpush1.bf16.msra.mxu0 0
    %267 = vmatprep.subr.bf16.mxu0 0
    %268 = vmatpush1.bf16.msra.mxu0 0
    %269 = vmatprep.subr.bf16.mxu0 0
    %270 = vmatpush1.bf16.msra.mxu0 0
    %271 = vmatprep.subr.bf16.mxu0 0
    %272 = vmatpush1.bf16.msra.mxu0 0
    %273 = vmatprep.mubr.bf16.mxu0 0
    %274 = vmatmul.mubr.bf16.gmra.mrb[0].mxu0 %v166
    %v275 = vpop.f32.mrb[0].mxu0
    %v276 = vadd.f32 %v191, %v275
    %v277 = vpop.f32.mrb[0].mxu0
    %v278 = vpop.f32.mrb[0].mxu0
    %v279 = vadd.f32 %v191, %v278
    %v280 = vpop.f32.mrb[0].mxu0
    %281 = vmatprep.mubr.bf16.mxu0 0
    %282 = vmatmul.mubr.bf16.gmra.mrb[0].mxu0 %v167
    %v283 = vpop.f32.mrb[0].mxu0
    %v284 = vadd.f32 %v191, %v283
    %v285 = vpop.f32.mrb[0].mxu0
    %v286 = vpop.f32.mrb[0].mxu0
    %v287 = vadd.f32 %v191, %v286
    %v288 = vpop.f32.mrb[0].mxu0
    %289 = vdwg.mxu0
    %v290 = vsub.f32 0.0, %v276
    %v291 = vsub.f32 0.0, %v279
    %v292 = vsub.f32 0.0, %v284
    %v293 = vsub.f32 0.0, %v287
    %v294 = vmul.f32 %v290, 1.442695
    %v295 = vpow.pop %v294
    %v296 = vmul.f32 %v291, 1.442695
    %v297 = vpow.pop %v296
    %v298 = vmul.f32 %v292, 1.442695
    %v299 = vpow.pop %v298
    %v300 = vmul.f32 %v293, 1.442695
    %v301 = vpow.pop %v300
    %v302 = vadd.f32 %v295, 1.0
    %v303 = vadd.f32 %v297, 1.0
    %v304 = vadd.f32 %v299, 1.0
    %v305 = vadd.f32 %v301, 1.0
    %v306 = vrcp.pop %v302
    %v307 = vrcp.pop %v303
    %v308 = vrcp.pop %v304
    %v309 = vrcp.pop %v305
    %v310 = vmul.f32 %v276, %v306
    %v311 = vmul.f32 %v279, %v307
    %v312 = vmul.f32 %v284, %v308
    %v313 = vmul.f32 %v287, %v309
    %v314 = vld [vmem:[%s5] sm:$0xf]
    %v315 = vld [vmem:[%s5 + $0x4] sm:$0xf]
    %v316 = vld [vmem:[%s5 + $0x8] sm:$0xf]
    %v317 = vld [vmem:[%s5 + $0xc] sm:$0xf]
    %v318 = vld [vmem:[%s5 + $0x10] sm:$0xf]
    %v319 = vld [vmem:[%s5 + $0x14] sm:$0xf]
    %v320 = vld [vmem:[%s5 + $0x18] sm:$0xf]
    %v321 = vld [vmem:[%s5 + $0x1c] sm:$0xf]
    %v322 = vld [vmem:[%s5 + $0x20] sm:$0xf]
    %v323 = vld [vmem:[%s5 + $0x24] sm:$0xf]
    %v324 = vld [vmem:[%s5 + $0x28] sm:$0xf]
    %v325 = vld [vmem:[%s5 + $0x2c] sm:$0xf]
    %v326 = vld [vmem:[%s5 + $0x30] sm:$0xf]
    %v327 = vld [vmem:[%s5 + $0x34] sm:$0xf]
    %v328 = vld [vmem:[%s5 + $0x38] sm:$0xf]
    %v329 = vld [vmem:[%s5 + $0x3c] sm:$0xf]
    %v330 = vld [vmem:[%s6] sm:$0x1]
    %v332 = vlaneseq
    %v333 = vshrl.u32 %v332, 7
    %v334 = vsub.s32 0, %v333
    %v335 = vrot.slane %v330, %v334
    %v353 = vunpack.c.l.b16 %v314
    %v354 = vunpack.c.l.b16 %v315
    %v355 = vunpack.c.l.b16 %v316
    %v356 = vunpack.c.l.b16 %v317
    %v357 = vunpack.c.l.b16 %v318
    %v358 = vunpack.c.l.b16 %v319
    %v359 = vunpack.c.l.b16 %v320
    %v360 = vunpack.c.l.b16 %v321
    %v361 = vunpack.c.l.b16 %v322
    %v362 = vunpack.c.l.b16 %v323
    %v363 = vunpack.c.l.b16 %v324
    %v364 = vunpack.c.l.b16 %v325
    %v365 = vunpack.c.l.b16 %v326
    %v366 = vunpack.c.l.b16 %v327
    %v367 = vunpack.c.l.b16 %v328
    %v368 = vunpack.c.l.b16 %v329
    %v369 = vpack.c.b16 %v354, %v353
    %v370 = vpack.c.b16 %v356, %v355
    %v371 = vpack.c.b16 %v358, %v357
    %v372 = vpack.c.b16 %v360, %v359
    %v373 = vpack.c.b16 %v362, %v361
    %v374 = vpack.c.b16 %v364, %v363
    %v375 = vpack.c.b16 %v366, %v365
    %v376 = vpack.c.b16 %v368, %v367
    %385 = vmatprep.subr.bf16.mxu0 0
    %386 = vmatpush1.bf16.msra.mxu0 %v369
    %387 = vmatprep.subr.bf16.mxu0 0
    %388 = vmatpush1.bf16.msra.mxu0 %v370
    %389 = vmatprep.subr.bf16.mxu0 0
    %390 = vmatpush1.bf16.msra.mxu0 %v371
    %391 = vmatprep.subr.bf16.mxu0 0
    %392 = vmatpush1.bf16.msra.mxu0 %v372
    %393 = vmatprep.subr.bf16.mxu0 0
    %394 = vmatpush1.bf16.msra.mxu0 %v373
    %395 = vmatprep.subr.bf16.mxu0 0
    %396 = vmatpush1.bf16.msra.mxu0 %v374
    %397 = vmatprep.subr.bf16.mxu0 0
    %398 = vmatpush1.bf16.msra.mxu0 %v375
    %399 = vmatprep.subr.bf16.mxu0 0
    %400 = vmatpush1.bf16.msra.mxu0 %v376
    %401 = vmatprep.subr.bf16.mxu0 0
    %402 = vmatpush1.bf16.msra.mxu0 0
    %403 = vmatprep.subr.bf16.mxu0 0
    %404 = vmatpush1.bf16.msra.mxu0 0
    %405 = vmatprep.subr.bf16.mxu0 0
    %406 = vmatpush1.bf16.msra.mxu0 0
    %407 = vmatprep.subr.bf16.mxu0 0
    %408 = vmatpush1.bf16.msra.mxu0 0
    %409 = vmatprep.subr.bf16.mxu0 0
    %410 = vmatpush1.bf16.msra.mxu0 0
    %411 = vmatprep.subr.bf16.mxu0 0
    %412 = vmatpush1.bf16.msra.mxu0 0
    %413 = vmatprep.subr.bf16.mxu0 0
    %414 = vmatpush1.bf16.msra.mxu0 0
    %415 = vmatprep.subr.bf16.mxu0 0
    %416 = vmatpush1.bf16.msra.mxu0 0
    %417 = vmatprep.mubr.bf16.mxu0 0
    %418 = vmatmul.mubr.bf16.gmra.mrb[0].mxu0 %v168
    %v419 = vpop.f32.mrb[0].mxu0
    %v420 = vadd.f32 %v335, %v419
    %v421 = vpop.f32.mrb[0].mxu0
    %v422 = vpop.f32.mrb[0].mxu0
    %v423 = vadd.f32 %v335, %v422
    %v424 = vpop.f32.mrb[0].mxu0
    %425 = vmatprep.mubr.bf16.mxu0 0
    %426 = vmatmul.mubr.bf16.gmra.mrb[0].mxu0 %v169
    %v427 = vpop.f32.mrb[0].mxu0
    %v428 = vadd.f32 %v335, %v427
    %v429 = vpop.f32.mrb[0].mxu0
    %v430 = vpop.f32.mrb[0].mxu0
    %v431 = vadd.f32 %v335, %v430
    %v432 = vpop.f32.mrb[0].mxu0
    %433 = vdwg.mxu0
    %v434 = vsub.f32 0.0, %v420
    %v435 = vsub.f32 0.0, %v423
    %v436 = vsub.f32 0.0, %v428
    %v437 = vsub.f32 0.0, %v431
    %v438 = vmul.f32 %v434, 1.442695
    %v439 = vpow.pop %v438
    %v440 = vmul.f32 %v435, 1.442695
    %v441 = vpow.pop %v440
    %v442 = vmul.f32 %v436, 1.442695
    %v443 = vpow.pop %v442
    %v444 = vmul.f32 %v437, 1.442695
    %v445 = vpow.pop %v444
    %v446 = vadd.f32 %v439, 1.0
    %v447 = vadd.f32 %v441, 1.0
    %v448 = vadd.f32 %v443, 1.0
    %v449 = vadd.f32 %v445, 1.0
    %v450 = vrcp.pop %v446
    %v451 = vrcp.pop %v447
    %v452 = vrcp.pop %v448
    %v453 = vrcp.pop %v449
    %v454 = vmul.f32 %v310, %v450
    %v455 = vmul.f32 %v311, %v451
    %v456 = vmul.f32 %v312, %v452
    %v457 = vmul.f32 %v313, %v453
    %vm458 = vcmask 261120
    %459 = vst.msk [vmem:[#allocation2] sm:$0xff] %vm458, %v454
    %460 = vst.msk [vmem:[#allocation2 + $0x8] sm:$0xff] %vm458, %v455
    %461 = vst.msk [vmem:[#allocation2 + $0x10] sm:$0xff] %vm458, %v456
    %462 = vst.msk [vmem:[#allocation2 + $0x18] sm:$0xff] %vm458, %v457
    // Predicated region
    $region30: #{tpu_custom_call.1} parent=1 // pred_check
      _
    $region31: #{tpu_custom_call.1} parent=1 // pred_check_branch
      %464 = sbr.rel (0) target = $region33
    $region32: #{tpu_custom_call.1} parent=1 // pred_region
      %s466 = ssub.s32 512, 512
      %467 = vsyncadd [#allocation3], %s466
      %s468 = sshll.u32 [#allocation2], 4
      %s469 = int_to_ptr.vmem [resolvable:$true] %s468
      %474 = dma.vmem_to_hbm [thread:$0]  %s469, 512, %s7, [#allocation3], 128, 128, 8
    $region33: #{tpu_custom_call.1} parent=1 // pred_fallthru
      _
    // Predicated region
    $region34: #{tpu_custom_call.1} parent=1 // pred_check
      _
    $region35: #{tpu_custom_call.1} parent=1 // pred_check_branch
      %476 = sbr.rel (0) target = $region37
    $region36: #{tpu_custom_call.1} parent=1 // pred_region
      %477 = dma.done [#allocation3], 512
    $region37: #{tpu_custom_call.1} parent=1 // pred_fallthru
      _
    %478 = vsyncpa [#allocation3], 1

</llo_original>
